<compile_context>
chip_gen: v7x
topology: tpu7x:2x2x1
jax: 0.10.0
libtpu: 0.0.40
codegen_flags: <defaults>
</compile_context>

<pallas_src>
import jax
import jax.numpy as jnp
from jax.experimental import pallas as pl
from jax.experimental.pallas import tpu as pltpu


def _round_up(a, b):
    return (a + b - 1) // b * b


def _cdiv(a, b):
    return (a + b - 1) // b


def _choose_tiling(nc, h_out, wq, itemsize, tile_rows=None):
    """Pick (channel-block CB, H-tile TH, sublane alignment).

    Keeps the per-step main input block around <=2 MiB (so double-buffered
    blocks fit every generation, incl. v7x's 64 MiB VMEM, with headroom),
    keeps TH sublane-aligned (8 rows f32 / 16 rows bf16), and exposes >=2
    independent grid blocks whenever the shape allows it.
    """
    th_align = 8 if itemsize >= 4 else (16 if itemsize == 2 else 32)
    target = 2 << 20  # main-input block budget per grid step

    th = _round_up(tile_rows if tile_rows is not None else max(h_out, 1), th_align)
    cb = nc
    # Shrink the channel block first (free), then the H tile (only duplicates
    # the 1-row halo read).
    while cb > 1 and cb % 2 == 0 and 4 * cb * th * wq * itemsize > target:
        cb //= 2
    while th > th_align and 4 * cb * th * wq * itemsize > target:
        th = _round_up(th // 2, th_align)
    # Guarantee >=2 grid blocks (megacore / v7x dual TC, DMA/compute overlap)
    # when the problem is splittable at all.
    if _cdiv(nc, cb) * _cdiv(h_out, th) < 2:
        if cb > 1:
            cb = _cdiv(cb, 2)
        elif th > th_align:
            th = _round_up(th // 2, th_align)
    return cb, th, th_align


def _maxpool3x3s2_relu_kernel(x_ref, halo_ref, o_ref):
    """3x3 / stride-2 / pad-1 max pool + ReLU for one (channel-block, H-tile).

    x_ref:    (2, 2, CB, TH, Wq)      parity-split main block:
              x_ref[ph, pw, c, i, j] = x_padded[c, 2*(i + TH*ht) + ph, 2*j + pw]
    halo_ref: (1, 2, CB, TH_ALIGN, Wq) even-row parity planes starting at tile
              row TH (only its row 0 is used): the "+1 row" halo of this tile.
    o_ref:    (CB, TH, w_out)
    """
    cb, th, w_out = o_ref.shape

    # Read the parity planes as separate ref loads (no single huge live value).
    ee = x_ref[0, 0, :, :, :]      # even rows, even cols   (CB, TH, Wq)
    eo = x_ref[0, 1, :, :, :]      # even rows, odd  cols
    oe = x_ref[1, 0, :, :, :]      # odd  rows, even cols
    oo = x_ref[1, 1, :, :, :]      # odd  rows, odd  cols
    hee = halo_ref[0, 0, :, :, :][:, :1, :]   # (CB, 1, Wq) halo even row, even cols
    heo = halo_ref[0, 1, :, :, :][:, :1, :]   # (CB, 1, Wq) halo even row, odd  cols

    # Separable stage 1 (W): window cols {2ow, 2ow+1, 2ow+2}
    #   -> even[ow], odd[ow], even[ow+1]  (plain lane slices, no strides).
    re = jnp.maximum(jnp.maximum(ee[..., :w_out], eo[..., :w_out]),
                     ee[..., 1:w_out + 1])            # (CB, TH, w_out)
    ro = jnp.maximum(jnp.maximum(oe[..., :w_out], oo[..., :w_out]),
                     oe[..., 1:w_out + 1])            # (CB, TH, w_out)
    rh = jnp.maximum(jnp.maximum(hee[..., :w_out], heo[..., :w_out]),
                     hee[..., 1:w_out + 1])           # (CB, 1,  w_out)

    # Separable stage 2 (H): window rows {2oh, 2oh+1, 2oh+2}
    #   -> re[oh], ro[oh], re[oh+1]; the last tile row takes re[oh+1] from the
    #   halo. Two dense stores with fused ReLU (no concat, no strided ops).
    body = jnp.maximum(jnp.maximum(re[:, :th - 1, :], ro[:, :th - 1, :]),
                       re[:, 1:th, :])
    o_ref[:, :th - 1, :] = jnp.maximum(body, 0).astype(o_ref.dtype)
    last = jnp.maximum(jnp.maximum(re[:, th - 1:th, :], ro[:, th - 1:th, :]), rh)
    o_ref[:, th - 1:th, :] = jnp.maximum(last, 0).astype(o_ref.dtype)


def ukan_downsample_block(x, kernel_size=3, stride=2, *, tile_rows=None):
    """MaxPool2d(kernel_size=3, stride=2, padding=1) + ReLU, NCHW in / NCHW out."""
    if kernel_size != 3 or stride != 2:
        raise NotImplementedError("kernel specialised to kernel_size=3, stride=2")
    n, c, h, w = x.shape
    nc = n * c
    dtype = x.dtype
    itemsize = jnp.dtype(dtype).itemsize
    pad = (kernel_size - 1) // 2                       # = 1
    h_out = (h + 2 * pad - kernel_size) // stride + 1
    w_out = (w + 2 * pad - kernel_size) // stride + 1
    wq = w_out + 1                                     # half-width incl. right halo col

    cb, th, th_align = _choose_tiling(nc, h_out, wq, itemsize, tile_rows)
    n_cb = _cdiv(nc, cb)
    n_ht = _cdiv(h_out, th)
    hq = n_ht * th + th_align                          # even/odd plane rows incl. halo slack
    hp, wp = 2 * hq, 2 * wq                            # padded input extents

    # (N,C,H,W) -> (N*C,H,W) is free; the only wrapper data movement is one pad
    # + one parity-split transpose (vs. 3 full passes + a 16x lane-padding
    # blow-up before). -inf padding keeps PyTorch max-pool border semantics
    # exact regardless of the fused activation.
    y = x.reshape(nc, h, w)
    y = jnp.pad(y, ((0, 0), (pad, hp - h - pad), (pad, wp - w - pad)),
                constant_values=-jnp.inf)
    # Stride-2 parity split (space-to-depth):
    #   y5[ph, pw, k, i, j] = y_padded[k, 2*i + ph, 2*j + pw]
    y5 = jnp.transpose(y.reshape(nc, hq, 2, wq, 2), (2, 4, 0, 1, 3))
    # TODO(synk): an in-kernel stride-2 sublane deinterleave would remove this
    #             last wrapper pass, but strided ref reads failed to lower in an
    #             earlier revision, so the parity split stays in the wrapper.

    # Explicit per-step VMEM accounting: double-buffered main + halo inputs and
    # output, plus the kernel's slab temporaries (re/ro/body + rh) and headroom.
    main_blk = 4 * cb * th * wq * itemsize
    halo_blk = 2 * cb * th_align * wq * itemsize
    out_blk = cb * th * w_out * itemsize
    tmp_blk = (3 * cb * th * w_out + cb * wq) * itemsize
    vmem_limit = int(min(max(2 * (main_blk + halo_blk + out_blk) + tmp_blk + (2 << 20),
                             8 << 20),
                         48 << 20))                    # stays well inside v7x's 64 MiB

    halo_step = th // th_align                         # halo offset in th_align-row blocks

    out = pl.pallas_call(
        _maxpool3x3s2_relu_kernel,
        out_shape=jax.ShapeDtypeStruct((nc, n_ht * th, w_out), dtype),
        grid=(n_cb, n_ht),
        in_specs=[
            # Main parity-split block for this (channel-block, H-tile).
            pl.BlockSpec((2, 2, cb, th, wq),
                         lambda cbi, hti: (0, 0, cbi, hti, 0)),
            # Same array again: the even-row planes starting at the next tile's
            # first row (the +1-row halo). Sublane-aligned (th_align rows),
            # always in bounds because hq = n_ht*th + th_align.
            pl.BlockSpec((1, 2, cb, th_align, wq),
                         lambda cbi, hti: (0, 0, cbi, (hti + 1) * halo_step, 0)),
        ],
        out_specs=pl.BlockSpec((cb, th, w_out), lambda cbi, hti: (cbi, hti, 0)),
        compiler_params=pltpu.CompilerParams(
            dimension_semantics=("parallel", "parallel"),
            vmem_limit_bytes=vmem_limit,
        ),
    )(y5, y5)

    # (N*C, n_ht*TH, w_out) -> NCHW; the reshape is free, the row slice only
    # copies when h_out was rounded up to the tile size.
    return out[:, :h_out, :].reshape(n, c, h_out, w_out)


def _reference(x, kernel_size=3, stride=2):
    """Pure-JAX reference: reduce_window max pool (NCHW, -inf padding) + ReLU."""
    pad = (kernel_size - 1) // 2
    pooled = jax.lax.reduce_window(
        x, -jnp.inf, jax.lax.max,
        window_dimensions=(1, 1, kernel_size, kernel_size),
        window_strides=(1, 1, stride, stride),
        padding=((0, 0), (0, 0), (pad, pad), (pad, pad)),
    )
    return jnp.maximum(pooled, 0.0)


if __name__ == "__main__":
    key = jax.random.PRNGKey(0)
    k1, k2 = jax.random.split(key)

    # Case 1: the module-sized example (B=2, C=4, 16x16). Auto tiling gives a
    # (2 channel-blocks x 1 H-tile) grid; the last valid output row exercises
    # the halo path with real data.
    x1 = jax.random.normal(k1, (2, 4, 16, 16), dtype=jnp.float32)
    out1 = jax.block_until_ready(jax.jit(ukan_downsample_block)(x1))
    ref1 = _reference(x1)
    assert out1.shape == ref1.shape, (out1.shape, ref1.shape)
    assert jnp.allclose(out1, ref1, atol=1e-6, rtol=1e-6), "case-1 mismatch"

    # Case 2: odd spatial dims + forced 8-row tiles -> multi-H-tile grid, so the
    # cross-tile halo and the boundary (-inf) padding paths are both checked.
    x2 = jax.random.normal(k2, (1, 3, 23, 18), dtype=jnp.float32)
    fwd2 = jax.jit(lambda v: ukan_downsample_block(v, tile_rows=8))
    out2 = jax.block_until_ready(fwd2(x2))
    ref2 = _reference(x2)
    assert out2.shape == ref2.shape, (out2.shape, ref2.shape)
    assert jnp.allclose(out2, ref2, atol=1e-6, rtol=1e-6), "case-2 mismatch"

    print("KERNEL_OK")
</pallas_src>

<mosaic_0001>
module attributes {stable_mosaic.version = 11 : i64} {
  func.func @_maxpool3x3s2_relu_kernel(%arg0: i32, %arg1: i32, %arg2: memref<2x2x4x8x9xf32, #tpu.memory_space<vmem>>, %arg3: memref<1x2x4x8x9xf32, #tpu.memory_space<vmem>>, %arg4: memref<4x8x8xf32, #tpu.memory_space<vmem>>) attributes {dimension_semantics = [#tpu.dimension_semantics<parallel>, #tpu.dimension_semantics<parallel>], iteration_bounds = array<i64: 2, 1>, scalar_prefetch = 0 : i64, scratch_operands = 0 : i64, tpu.core_type = #tpu.core_type<tc>, window_params = [{transform_indices = @transform_0, window_bounds = array<i64: 2, 2, 4, 8, 9>}, {transform_indices = @transform_1, window_bounds = array<i64: 1, 2, 4, 8, 9>}, {transform_indices = @transform_2, window_bounds = array<i64: 4, 8, 8>}]} {
    %c0 = arith.constant 0 : index
    %c0_0 = arith.constant 0 : index
    %c0_1 = arith.constant 0 : index
    %c0_2 = arith.constant 0 : index
    %c0_3 = arith.constant 0 : index
    %0 = vector.load %arg2[%c0, %c0_0, %c0_1, %c0_2, %c0_3] : memref<2x2x4x8x9xf32, #tpu.memory_space<vmem>>, vector<1x1x4x8x9xf32>
    %1 = vector.shape_cast %0 : vector<1x1x4x8x9xf32> to vector<4x8x9xf32>
    %c0_4 = arith.constant 0 : index
    %c1 = arith.constant 1 : index
    %c0_5 = arith.constant 0 : index
    %c0_6 = arith.constant 0 : index
    %c0_7 = arith.constant 0 : index
    %2 = vector.load %arg2[%c0_4, %c1, %c0_5, %c0_6, %c0_7] : memref<2x2x4x8x9xf32, #tpu.memory_space<vmem>>, vector<1x1x4x8x9xf32>
    %3 = vector.shape_cast %2 : vector<1x1x4x8x9xf32> to vector<4x8x9xf32>
    %c1_8 = arith.constant 1 : index
    %c0_9 = arith.constant 0 : index
    %c0_10 = arith.constant 0 : index
    %c0_11 = arith.constant 0 : index
    %c0_12 = arith.constant 0 : index
    %4 = vector.load %arg2[%c1_8, %c0_9, %c0_10, %c0_11, %c0_12] : memref<2x2x4x8x9xf32, #tpu.memory_space<vmem>>, vector<1x1x4x8x9xf32>
    %5 = vector.shape_cast %4 : vector<1x1x4x8x9xf32> to vector<4x8x9xf32>
    %c1_13 = arith.constant 1 : index
    %c1_14 = arith.constant 1 : index
    %c0_15 = arith.constant 0 : index
    %c0_16 = arith.constant 0 : index
    %c0_17 = arith.constant 0 : index
    %6 = vector.load %arg2[%c1_13, %c1_14, %c0_15, %c0_16, %c0_17] : memref<2x2x4x8x9xf32, #tpu.memory_space<vmem>>, vector<1x1x4x8x9xf32>
    %7 = vector.shape_cast %6 : vector<1x1x4x8x9xf32> to vector<4x8x9xf32>
    %c0_18 = arith.constant 0 : index
    %c0_19 = arith.constant 0 : index
    %c0_20 = arith.constant 0 : index
    %c0_21 = arith.constant 0 : index
    %c0_22 = arith.constant 0 : index
    %8 = vector.load %arg3[%c0_18, %c0_19, %c0_20, %c0_21, %c0_22] : memref<1x2x4x8x9xf32, #tpu.memory_space<vmem>>, vector<1x1x4x8x9xf32>
    %9 = vector.shape_cast %8 : vector<1x1x4x8x9xf32> to vector<4x8x9xf32>
    %10 = vector.extract_strided_slice %9 {offsets = [0, 0, 0], sizes = [4, 1, 9], strides = [1, 1, 1]} : vector<4x8x9xf32> to vector<4x1x9xf32>
    %c0_23 = arith.constant 0 : index
    %c1_24 = arith.constant 1 : index
    %c0_25 = arith.constant 0 : index
    %c0_26 = arith.constant 0 : index
    %c0_27 = arith.constant 0 : index
    %11 = vector.load %arg3[%c0_23, %c1_24, %c0_25, %c0_26, %c0_27] : memref<1x2x4x8x9xf32, #tpu.memory_space<vmem>>, vector<1x1x4x8x9xf32>
    %12 = vector.shape_cast %11 : vector<1x1x4x8x9xf32> to vector<4x8x9xf32>
    %13 = vector.extract_strided_slice %12 {offsets = [0, 0, 0], sizes = [4, 1, 9], strides = [1, 1, 1]} : vector<4x8x9xf32> to vector<4x1x9xf32>
    %14 = vector.extract_strided_slice %1 {offsets = [0, 0, 0], sizes = [4, 8, 8], strides = [1, 1, 1]} : vector<4x8x9xf32> to vector<4x8x8xf32>
    %15 = vector.extract_strided_slice %3 {offsets = [0, 0, 0], sizes = [4, 8, 8], strides = [1, 1, 1]} : vector<4x8x9xf32> to vector<4x8x8xf32>
    %16 = arith.maximumf %14, %15 : vector<4x8x8xf32>
    %17 = vector.extract_strided_slice %1 {offsets = [0, 0, 1], sizes = [4, 8, 8], strides = [1, 1, 1]} : vector<4x8x9xf32> to vector<4x8x8xf32>
    %18 = arith.maximumf %16, %17 : vector<4x8x8xf32>
    %19 = vector.extract_strided_slice %5 {offsets = [0, 0, 0], sizes = [4, 8, 8], strides = [1, 1, 1]} : vector<4x8x9xf32> to vector<4x8x8xf32>
    %20 = vector.extract_strided_slice %7 {offsets = [0, 0, 0], sizes = [4, 8, 8], strides = [1, 1, 1]} : vector<4x8x9xf32> to vector<4x8x8xf32>
    %21 = arith.maximumf %19, %20 : vector<4x8x8xf32>
    %22 = vector.extract_strided_slice %5 {offsets = [0, 0, 1], sizes = [4, 8, 8], strides = [1, 1, 1]} : vector<4x8x9xf32> to vector<4x8x8xf32>
    %23 = arith.maximumf %21, %22 : vector<4x8x8xf32>
    %24 = vector.extract_strided_slice %10 {offsets = [0, 0, 0], sizes = [4, 1, 8], strides = [1, 1, 1]} : vector<4x1x9xf32> to vector<4x1x8xf32>
    %25 = vector.extract_strided_slice %13 {offsets = [0, 0, 0], sizes = [4, 1, 8], strides = [1, 1, 1]} : vector<4x1x9xf32> to vector<4x1x8xf32>
    %26 = arith.maximumf %24, %25 : vector<4x1x8xf32>
    %27 = vector.extract_strided_slice %10 {offsets = [0, 0, 1], sizes = [4, 1, 8], strides = [1, 1, 1]} : vector<4x1x9xf32> to vector<4x1x8xf32>
    %28 = arith.maximumf %26, %27 : vector<4x1x8xf32>
    %29 = vector.extract_strided_slice %18 {offsets = [0, 0, 0], sizes = [4, 7, 8], strides = [1, 1, 1]} : vector<4x8x8xf32> to vector<4x7x8xf32>
    %30 = vector.extract_strided_slice %23 {offsets = [0, 0, 0], sizes = [4, 7, 8], strides = [1, 1, 1]} : vector<4x8x8xf32> to vector<4x7x8xf32>
    %31 = arith.maximumf %29, %30 : vector<4x7x8xf32>
    %32 = vector.extract_strided_slice %18 {offsets = [0, 1, 0], sizes = [4, 7, 8], strides = [1, 1, 1]} : vector<4x8x8xf32> to vector<4x7x8xf32>
    %33 = arith.maximumf %31, %32 : vector<4x7x8xf32>
    %cst = arith.constant 0.000000e+00 : f32
    %34 = vector.broadcast %cst : f32 to vector<4x7x8xf32>
    %35 = arith.maximumf %33, %34 : vector<4x7x8xf32>
    %c0_28 = arith.constant 0 : index
    %c0_29 = arith.constant 0 : index
    %c0_30 = arith.constant 0 : index
    %36 = vector.load %arg4[%c0_28, %c0_29, %c0_30] : memref<4x8x8xf32, #tpu.memory_space<vmem>>, vector<4x7x8xf32>
    tpu.vector_store %arg4[%c0_28, %c0_29, %c0_30], %35 {strides = array<i32>} : memref<4x8x8xf32, #tpu.memory_space<vmem>>, vector<4x7x8xf32>,
    %37 = vector.extract_strided_slice %18 {offsets = [0, 7, 0], sizes = [4, 1, 8], strides = [1, 1, 1]} : vector<4x8x8xf32> to vector<4x1x8xf32>
    %38 = vector.extract_strided_slice %23 {offsets = [0, 7, 0], sizes = [4, 1, 8], strides = [1, 1, 1]} : vector<4x8x8xf32> to vector<4x1x8xf32>
    %39 = arith.maximumf %37, %38 : vector<4x1x8xf32>
    %40 = arith.maximumf %39, %28 : vector<4x1x8xf32>
    %cst_31 = arith.constant 0.000000e+00 : f32
    %41 = vector.broadcast %cst_31 : f32 to vector<4x1x8xf32>
    %42 = arith.maximumf %40, %41 : vector<4x1x8xf32>
    %c0_32 = arith.constant 0 : index
    %c7 = arith.constant 7 : index
    %c0_33 = arith.constant 0 : index
    %43 = vector.load %arg4[%c0_32, %c7, %c0_33] : memref<4x8x8xf32, #tpu.memory_space<vmem>>, vector<4x1x8xf32>
    tpu.vector_store %arg4[%c0_32, %c7, %c0_33], %42 {strides = array<i32>} : memref<4x8x8xf32, #tpu.memory_space<vmem>>, vector<4x1x8xf32>,
    return
  }
  func.func @transform_0(%arg0: i32, %arg1: i32) -> (i32, i32, i32, i32, i32) {
    %c0_i32 = arith.constant 0 : i32
    %c0_i32_0 = arith.constant 0 : i32
    %c0_i32_1 = arith.constant 0 : i32
    %c0_i32_2 = arith.constant 0 : i32
    return %c0_i32, %c0_i32_0, %arg0, %arg1, %c0_i32_1 : i32, i32, i32, i32, i32
  }
  func.func @transform_1(%arg0: i32, %arg1: i32) -> (i32, i32, i32, i32, i32) {
    %c1_i32 = arith.constant 1 : i32
    %0 = arith.addi %arg1, %c1_i32 : i32
    %c1_i32_0 = arith.constant 1 : i32
    %1 = arith.muli %0, %c1_i32_0 : i32
    %c0_i32 = arith.constant 0 : i32
    %c0_i32_1 = arith.constant 0 : i32
    %c0_i32_2 = arith.constant 0 : i32
    %c0_i32_3 = arith.constant 0 : i32
    return %c0_i32, %c0_i32_1, %arg0, %1, %c0_i32_2 : i32, i32, i32, i32, i32
  }
  func.func @transform_2(%arg0: i32, %arg1: i32) -> (i32, i32, i32) {
    %c0_i32 = arith.constant 0 : i32
    %c0_i32_0 = arith.constant 0 : i32
    return %arg0, %arg1, %c0_i32 : i32, i32, i32
  }
}

</mosaic_0001>

<llo_original>
// kernel: ukan_downsample_block.1
$region0: #{ukan_downsample_block.1}
  #allocation0 [shape = 'u32[]', space=smem, size = 0x4, offset = 0x4, fixed_abs, tag = 'smem constant byte address 0x4 - core index']
  #allocation1 [shape = 'u32[144,128]{1,0:T(1,128)}', space=vmem, size = 0x12000, scoped, tag = 'internal scratch']
  %s0 = inlined_call_operand.vmem [shape: f32[2,2,8,16,9], index: 0, kind: input, shape index: {}, may-alias: {0,1}]
  %s1 = inlined_call_operand.vmem [shape: f32[2,2,8,16,9], index: 1, kind: input, shape index: {}, may-alias: {0,1}]
  %s2 = inlined_call_operand.hbm [shape: f32[8,8,8], index: 2, kind: output, shape index: {}]
  %s3 = sld [smem:[#allocation0]]
  $region117: #{ukan_downsample_block.1} parent=0
    _
  %s5 = ssub.s32 1, %s3
  %s6 = scalar_select 0, %s5, %s3
  $region1: #{ukan_downsample_block.1} parent=0
    #allocation2 [shape = 'u8[131072]{0}', space=vmem, size = 0x20000, scoped, tag = 'input window, operand 0']
    #allocation3 [shape = 'u8[65536]{0}', space=vmem, size = 0x10000, scoped, tag = 'input window, operand 1']
    #allocation4 [shape = 'u8[32768]{0}', space=vmem, size = 0x8000, scoped, tag = 'output window, operand 0']
    #allocation5 [shape = 's32[2]{0}', space=sflag, size = 0x8, scoped, tag = 'scoped memory for ukan_downsample_block.1']
    %7 = vsyncpa [#allocation5], 0
    %s8 = scalar_lea.sflag [#allocation5], 1
    %9 = vsyncpa %s8, 0
    loop: start=0, step=1, limit=4
    $region2: #{ukan_downsample_block.1} parent=1 // loop_pre_header
      _
    $region3: #{ukan_downsample_block.1} parent=1 // loop_header
      %s11 = sphi 0, %s15
      %p12 = scmp.ge.s32.totalorder %s11, 4
      %s18 = sphi 0, %s30
      %s19 = sphi 0, %s26
      %s20 = sphi 0, %s18
      %s21 = sphi 0, %s19
      %s22 = sphi 0, %s20
      %s23 = sphi 0, %s21
      %s35 = sphi 0, %s37
      %s38 = sphi 0, %s35
      %s39 = sphi 0, %s38
      %s55 = sphi 0, %s39
      %s65 = sphi 0, %s67
      %s68 = sphi 0, %s65
      %s69 = sphi 0, %s68
      %s85 = sphi 0, %s69
      %s93 = sphi 0, %s95
      %s96 = sphi 0, %s93
      %s97 = sphi 0, %s96
      %s113 = sphi 0, %s97
    $region4: #{ukan_downsample_block.1} parent=1 // loop_header_branch
      %14 = sbr.rel (%p12) target = $region8
    $region5: #{ukan_downsample_block.1} parent=1 // loop_body
      %s16 = ssub.s32 %s11, 1
      %s17 = ssub.s32 %s11, 2
      %s24 = sadd.s32 1, %s19
      %p25 = scmp.ge.s32.totalorder %s24, 1
      %s26 = scalar_select %p25, 0, %s24
      %s27 = sadd.s32 1, %s18
      %s28 = scalar_select %p25, %s27, %s18
      %p29 = scmp.ge.s32.totalorder %s28, 2
      %s30 = scalar_select %p29, 0, %s28
      %s31 = ssub.s32 %s18, %s30
      %s32 = ssub.s32 %s19, %s26
      %s33 = sor.u32 %s31, %s32
      %p34 = scmp.eq.s32.totalorder %s33, 0
      %s36 = sadd.s32 %s35, 1
      %s37 = scalar_select %p34, %s35, %s36
      %p40 = pneg %p34
      %p41 = scmp.eq.s32.totalorder %s11, 1
      %p42 = por %p40, %p41
      %p43 = scmp.ne.s32.totalorder %s35, %s38
      %p44 = scmp.eq.s32.totalorder %s11, 0
      %p45 = por %p43, %p44
      %p46 = scmp.ne.s32.totalorder %s35, %s38
      %p47 = scmp.eq.s32.totalorder %s16, 1
      %p48 = por %p46, %p47
      %p49 = scmp.ne.s32.totalorder %s38, %s39
      %p50 = scmp.eq.s32.totalorder %s16, 0
      %p51 = por %p49, %p50
      %p52 = scmp.ne.s32.totalorder %s38, %s39
      %p53 = scmp.eq.s32.totalorder %s17, 1
      %p54 = por %p52, %p53
      %p56 = scmp.ne.s32.totalorder %s39, %s55
      %p57 = scmp.eq.s32.totalorder %s17, 0
      %p58 = por %p56, %p57
      %s59 = sadd.s32 %s19, 1
      %s60 = sadd.s32 %s26, 1
      %s61 = ssub.s32 %s18, %s30
      %s62 = ssub.s32 %s59, %s60
      %s63 = sor.u32 %s61, %s62
      %p64 = scmp.eq.s32.totalorder %s63, 0
      %s66 = sadd.s32 %s65, 1
      %s67 = scalar_select %p64, %s65, %s66
      %p70 = pneg %p64
      %p71 = scmp.eq.s32.totalorder %s11, 1
      %p72 = por %p70, %p71
      %p73 = scmp.ne.s32.totalorder %s65, %s68
      %p74 = scmp.eq.s32.totalorder %s11, 0
      %p75 = por %p73, %p74
      %p76 = scmp.ne.s32.totalorder %s65, %s68
      %p77 = scmp.eq.s32.totalorder %s16, 1
      %p78 = por %p76, %p77
      %p79 = scmp.ne.s32.totalorder %s68, %s69
      %p80 = scmp.eq.s32.totalorder %s16, 0
      %p81 = por %p79, %p80
      %p82 = scmp.ne.s32.totalorder %s68, %s69
      %p83 = scmp.eq.s32.totalorder %s17, 1
      %p84 = por %p82, %p83
      %p86 = scmp.ne.s32.totalorder %s69, %s85
      %p87 = scmp.eq.s32.totalorder %s17, 0
      %p88 = por %p86, %p87
      %s89 = ssub.s32 %s18, %s30
      %s90 = ssub.s32 %s19, %s26
      %s91 = sor.u32 %s89, %s90
      %p92 = scmp.eq.s32.totalorder %s91, 0
      %s94 = sadd.s32 %s93, 1
      %s95 = scalar_select %p92, %s93, %s94
      %p98 = pneg %p92
      %p99 = scmp.eq.s32.totalorder %s11, 1
      %p100 = por %p98, %p99
      %p101 = scmp.ne.s32.totalorder %s93, %s96
      %p102 = scmp.eq.s32.totalorder %s11, 0
      %p103 = por %p101, %p102
      %p104 = scmp.ne.s32.totalorder %s93, %s96
      %p105 = scmp.eq.s32.totalorder %s16, 1
      %p106 = por %p104, %p105
      %p107 = scmp.ne.s32.totalorder %s96, %s97
      %p108 = scmp.eq.s32.totalorder %s16, 0
      %p109 = por %p107, %p108
      %p110 = scmp.ne.s32.totalorder %s96, %s97
      %p111 = scmp.eq.s32.totalorder %s17, 1
      %p112 = por %p110, %p111
      %p114 = scmp.ne.s32.totalorder %s97, %s113
      %p115 = scmp.eq.s32.totalorder %s17, 0
      %p116 = por %p114, %p115
      %p117 = scmp.le.s32.totalorder 1, %s11
      %p118 = scmp.lt.s32.totalorder %s11, 3
      %p119 = pnand %p117, %p118
      %p120 = pneg %p119
      // Predicated region
      $region9: #{ukan_downsample_block.1} parent=5 // pred_check
        _
      $region10: #{ukan_downsample_block.1} parent=5 // pred_check_branch
        %122 = sbr.rel (%p119) target = $region12
      $region11: #{ukan_downsample_block.1} parent=5 // pred_region
        %s123 = ssub.s32 %s11, 1
      $region12: #{ukan_downsample_block.1} parent=5 // pred_fallthru
        _
      %p124 = scmp.lt.s32.totalorder %s11, 2
      // Predicated region
      $region13: #{ukan_downsample_block.1} parent=5 // pred_check
        %p125 = pneg %p124
      $region14: #{ukan_downsample_block.1} parent=5 // pred_check_branch
        %127 = sbr.rel (%p125) target = $region16
      $region15: #{ukan_downsample_block.1} parent=5 // pred_region
        // Predicated region
        $region17: #{ukan_downsample_block.1} parent=15 // pred_check
          %p128 = pneg %p45
        $region18: #{ukan_downsample_block.1} parent=15 // pred_check_branch
          %130 = sbr.rel (%p128) target = $region20
        $region19: #{ukan_downsample_block.1} parent=15 // pred_region
          %s131 = sand.u32 %s35, 1
          %s132 = sand.u32 %s35, 1
          %s133 = smul.addr %s132, 128
          %s134 = scalar_lea.vmem [#allocation2], %s133
          %s135 = smul.u32 4, %s18
          %s136 = smul.addr %s135, 2
          %s137 = sadd.s32 %s19, %s136
          %s138 = smul.addr %s137, 8
          %s139 = scalar_lea.vmem %s0, %s138
          // Predicated region
          $region21: #{ukan_downsample_block.1} parent=19 // pred_check
            _
          $region22: #{ukan_downsample_block.1} parent=19 // pred_check_branch
            %141 = sbr.rel (0) target = $region24
          $region23: #{ukan_downsample_block.1} parent=19 // pred_region
            // Predicated region
            $region25: #{ukan_downsample_block.1} parent=23 // pred_check
              _
            $region26: #{ukan_downsample_block.1} parent=23 // pred_check_branch
              %143 = sbr.rel (0) target = $region28
            $region27: #{ukan_downsample_block.1} parent=23 // pred_region
              // Predicated region
              $region40: #{ukan_downsample_block.1} parent=27 // pred_check
                _
              $region41: #{ukan_downsample_block.1} parent=27 // pred_check_branch
                %188 = sbr.rel (0) target = $region43
              $region42: #{ukan_downsample_block.1} parent=27 // pred_region
                loop: start=0, step=1, limit=1
                $region44: #{ukan_downsample_block.1} parent=42 // loop_pre_header
                  _
                $region45: #{ukan_downsample_block.1} parent=42 // loop_header
                  %s190 = sphi 0, %s194
                  %p191 = scmp.ge.s32.totalorder %s190, 1
                  %s195 = sphi %s139, %s139
                  %s196 = sphi %s134, %s134
                $region46: #{ukan_downsample_block.1} parent=42 // loop_header_branch
                  %193 = sbr.rel (%p191) target = $region50
                $region47: #{ukan_downsample_block.1} parent=42 // loop_body
                  %v197 = vld [vmem:[%s195] sm:$0xff]
                  %198 = vst [vmem:[%s196] sm:$0xff] %v197
                  %v199 = vld [vmem:[%s195 + $0x10] sm:$0xff]
                  %200 = vst [vmem:[%s196 + $0x8] sm:$0xff] %v199
                  %v201 = vld [vmem:[%s195 + $0x20] sm:$0xff]
                  %202 = vst [vmem:[%s196 + $0x10] sm:$0xff] %v201
                  %v203 = vld [vmem:[%s195 + $0x30] sm:$0xff]
                  %204 = vst [vmem:[%s196 + $0x18] sm:$0xff] %v203
                  %v205 = vld [vmem:[%s195 + $0x80] sm:$0xff]
                  %206 = vst [vmem:[%s196 + $0x20] sm:$0xff] %v205
                  %v207 = vld [vmem:[%s195 + $0x90] sm:$0xff]
                  %208 = vst [vmem:[%s196 + $0x28] sm:$0xff] %v207
                  %v209 = vld [vmem:[%s195 + $0xa0] sm:$0xff]
                  %210 = vst [vmem:[%s196 + $0x30] sm:$0xff] %v209
                  %v211 = vld [vmem:[%s195 + $0xb0] sm:$0xff]
                  %212 = vst [vmem:[%s196 + $0x38] sm:$0xff] %v211
                  %v213 = vld [vmem:[%s195 + $0x100] sm:$0xff]
                  %214 = vst [vmem:[%s196 + $0x40] sm:$0xff] %v213
                  %v215 = vld [vmem:[%s195 + $0x110] sm:$0xff]
                  %216 = vst [vmem:[%s196 + $0x48] sm:$0xff] %v215
                  %v217 = vld [vmem:[%s195 + $0x120] sm:$0xff]
                  %218 = vst [vmem:[%s196 + $0x50] sm:$0xff] %v217
                  %v219 = vld [vmem:[%s195 + $0x130] sm:$0xff]
                  %220 = vst [vmem:[%s196 + $0x58] sm:$0xff] %v219
                  %v221 = vld [vmem:[%s195 + $0x180] sm:$0xff]
                  %222 = vst [vmem:[%s196 + $0x60] sm:$0xff] %v221
                  %v223 = vld [vmem:[%s195 + $0x190] sm:$0xff]
                  %224 = vst [vmem:[%s196 + $0x68] sm:$0xff] %v223
                  %v225 = vld [vmem:[%s195 + $0x1a0] sm:$0xff]
                  %226 = vst [vmem:[%s196 + $0x70] sm:$0xff] %v225
                  %v227 = vld [vmem:[%s195 + $0x1b0] sm:$0xff]
                  %228 = vst [vmem:[%s196 + $0x78] sm:$0xff] %v227
                $region48: #{ukan_downsample_block.1} parent=42 // loop_footer
                  %s194 = sadd.s32 1, %s190
                $region49: #{ukan_downsample_block.1} parent=42 // loop_footer_branch
                  %189 = sbr.rel target = $region45
                $region50: #{ukan_downsample_block.1} parent=42 // loop_exit
                  _
              $region43: #{ukan_downsample_block.1} parent=27 // pred_fallthru
                _
              // Predicated region
              $region51: #{ukan_downsample_block.1} parent=27 // pred_check
                _
              $region52: #{ukan_downsample_block.1} parent=27 // pred_check_branch
                %230 = sbr.rel target = $region54
              $region53: #{ukan_downsample_block.1} parent=27 // pred_region
                _
              $region54: #{ukan_downsample_block.1} parent=27 // pred_fallthru
                _
            $region28: #{ukan_downsample_block.1} parent=23 // pred_fallthru
              _
            // Predicated region
            $region29: #{ukan_downsample_block.1} parent=23 // pred_check
              _
            $region30: #{ukan_downsample_block.1} parent=23 // pred_check_branch
              %145 = sbr.rel target = $region32
            $region31: #{ukan_downsample_block.1} parent=23 // pred_region
              loop: start=0, step=1, limit=1
              $region33: #{ukan_downsample_block.1} parent=31 // loop_pre_header
                _
              $region34: #{ukan_downsample_block.1} parent=31 // loop_header
                %s148 = sphi 0, %s152
                %p149 = scmp.ge.s32.totalorder %s148, 1
                %s153 = sphi %s139, %s139
                %s154 = sphi %s134, %s134
              $region35: #{ukan_downsample_block.1} parent=31 // loop_header_branch
                %151 = sbr.rel (%p149) target = $region39
              $region36: #{ukan_downsample_block.1} parent=31 // loop_body
                %v155 = vld [vmem:[%s153] sm:$0xff]
                %156 = vst [vmem:[%s154] sm:$0xff] %v155
                %v157 = vld [vmem:[%s153 + $0x10] sm:$0xff]
                %158 = vst [vmem:[%s154 + $0x8] sm:$0xff] %v157
                %v159 = vld [vmem:[%s153 + $0x20] sm:$0xff]
                %160 = vst [vmem:[%s154 + $0x10] sm:$0xff] %v159
                %v161 = vld [vmem:[%s153 + $0x30] sm:$0xff]
                %162 = vst [vmem:[%s154 + $0x18] sm:$0xff] %v161
                %v163 = vld [vmem:[%s153 + $0x80] sm:$0xff]
                %164 = vst [vmem:[%s154 + $0x20] sm:$0xff] %v163
                %v165 = vld [vmem:[%s153 + $0x90] sm:$0xff]
                %166 = vst [vmem:[%s154 + $0x28] sm:$0xff] %v165
                %v167 = vld [vmem:[%s153 + $0xa0] sm:$0xff]
                %168 = vst [vmem:[%s154 + $0x30] sm:$0xff] %v167
                %v169 = vld [vmem:[%s153 + $0xb0] sm:$0xff]
                %170 = vst [vmem:[%s154 + $0x38] sm:$0xff] %v169
                %v171 = vld [vmem:[%s153 + $0x100] sm:$0xff]
                %172 = vst [vmem:[%s154 + $0x40] sm:$0xff] %v171
                %v173 = vld [vmem:[%s153 + $0x110] sm:$0xff]
                %174 = vst [vmem:[%s154 + $0x48] sm:$0xff] %v173
                %v175 = vld [vmem:[%s153 + $0x120] sm:$0xff]
                %176 = vst [vmem:[%s154 + $0x50] sm:$0xff] %v175
                %v177 = vld [vmem:[%s153 + $0x130] sm:$0xff]
                %178 = vst [vmem:[%s154 + $0x58] sm:$0xff] %v177
                %v179 = vld [vmem:[%s153 + $0x180] sm:$0xff]
                %180 = vst [vmem:[%s154 + $0x60] sm:$0xff] %v179
                %v181 = vld [vmem:[%s153 + $0x190] sm:$0xff]
                %182 = vst [vmem:[%s154 + $0x68] sm:$0xff] %v181
                %v183 = vld [vmem:[%s153 + $0x1a0] sm:$0xff]
                %184 = vst [vmem:[%s154 + $0x70] sm:$0xff] %v183
                %v185 = vld [vmem:[%s153 + $0x1b0] sm:$0xff]
                %186 = vst [vmem:[%s154 + $0x78] sm:$0xff] %v185
              $region37: #{ukan_downsample_block.1} parent=31 // loop_footer
                %s152 = sadd.s32 1, %s148
              $region38: #{ukan_downsample_block.1} parent=31 // loop_footer_branch
                %147 = sbr.rel target = $region34
              $region39: #{ukan_downsample_block.1} parent=31 // loop_exit
                _
            $region32: #{ukan_downsample_block.1} parent=23 // pred_fallthru
              _
          $region24: #{ukan_downsample_block.1} parent=19 // pred_fallthru
            _
          %231 = vnop
        $region20: #{ukan_downsample_block.1} parent=15 // pred_fallthru
          _
        // Predicated region
        $region55: #{ukan_downsample_block.1} parent=15 // pred_check
          %p232 = pneg %p75
        $region56: #{ukan_downsample_block.1} parent=15 // pred_check_branch
          %234 = sbr.rel (%p232) target = $region58
        $region57: #{ukan_downsample_block.1} parent=15 // pred_region
          %s235 = sand.u32 %s65, 1
          %s236 = sand.u32 %s65, 1
          %s237 = smul.addr %s236, 64
          %s238 = scalar_lea.vmem [#allocation3], %s237
          %s239 = sadd.s32 %s19, 1
          %s240 = smul.u32 4, %s18
          %s241 = smul.addr %s240, 2
          %s242 = sadd.s32 %s239, %s241
          %s243 = smul.addr %s242, 8
          %s244 = scalar_lea.vmem %s1, %s243
          // Predicated region
          $region59: #{ukan_downsample_block.1} parent=57 // pred_check
            _
          $region60: #{ukan_downsample_block.1} parent=57 // pred_check_branch
            %246 = sbr.rel (0) target = $region62
          $region61: #{ukan_downsample_block.1} parent=57 // pred_region
            // Predicated region
            $region63: #{ukan_downsample_block.1} parent=61 // pred_check
              _
            $region64: #{ukan_downsample_block.1} parent=61 // pred_check_branch
              %248 = sbr.rel (0) target = $region66
            $region65: #{ukan_downsample_block.1} parent=61 // pred_region
              // Predicated region
              $region78: #{ukan_downsample_block.1} parent=65 // pred_check
                _
              $region79: #{ukan_downsample_block.1} parent=65 // pred_check_branch
                %277 = sbr.rel (0) target = $region81
              $region80: #{ukan_downsample_block.1} parent=65 // pred_region
                loop: start=0, step=1, limit=1
                $region82: #{ukan_downsample_block.1} parent=80 // loop_pre_header
                  _
                $region83: #{ukan_downsample_block.1} parent=80 // loop_header
                  %s279 = sphi 0, %s283
                  %p280 = scmp.ge.s32.totalorder %s279, 1
                  %s284 = sphi %s244, %s244
                  %s285 = sphi %s238, %s238
                $region84: #{ukan_downsample_block.1} parent=80 // loop_header_branch
                  %282 = sbr.rel (%p280) target = $region88
                $region85: #{ukan_downsample_block.1} parent=80 // loop_body
                  %v286 = vld [vmem:[%s284] sm:$0xff]
                  %287 = vst [vmem:[%s285] sm:$0xff] %v286
                  %v288 = vld [vmem:[%s284 + $0x10] sm:$0xff]
                  %289 = vst [vmem:[%s285 + $0x8] sm:$0xff] %v288
                  %v290 = vld [vmem:[%s284 + $0x20] sm:$0xff]
                  %291 = vst [vmem:[%s285 + $0x10] sm:$0xff] %v290
                  %v292 = vld [vmem:[%s284 + $0x30] sm:$0xff]
                  %293 = vst [vmem:[%s285 + $0x18] sm:$0xff] %v292
                  %v294 = vld [vmem:[%s284 + $0x80] sm:$0xff]
                  %295 = vst [vmem:[%s285 + $0x20] sm:$0xff] %v294
                  %v296 = vld [vmem:[%s284 + $0x90] sm:$0xff]
                  %297 = vst [vmem:[%s285 + $0x28] sm:$0xff] %v296
                  %v298 = vld [vmem:[%s284 + $0xa0] sm:$0xff]
                  %299 = vst [vmem:[%s285 + $0x30] sm:$0xff] %v298
                  %v300 = vld [vmem:[%s284 + $0xb0] sm:$0xff]
                  %301 = vst [vmem:[%s285 + $0x38] sm:$0xff] %v300
                $region86: #{ukan_downsample_block.1} parent=80 // loop_footer
                  %s283 = sadd.s32 1, %s279
                $region87: #{ukan_downsample_block.1} parent=80 // loop_footer_branch
                  %278 = sbr.rel target = $region83
                $region88: #{ukan_downsample_block.1} parent=80 // loop_exit
                  _
              $region81: #{ukan_downsample_block.1} parent=65 // pred_fallthru
                _
              // Predicated region
              $region89: #{ukan_downsample_block.1} parent=65 // pred_check
                _
              $region90: #{ukan_downsample_block.1} parent=65 // pred_check_branch
                %303 = sbr.rel target = $region92
              $region91: #{ukan_downsample_block.1} parent=65 // pred_region
                _
              $region92: #{ukan_downsample_block.1} parent=65 // pred_fallthru
                _
            $region66: #{ukan_downsample_block.1} parent=61 // pred_fallthru
              _
            // Predicated region
            $region67: #{ukan_downsample_block.1} parent=61 // pred_check
              _
            $region68: #{ukan_downsample_block.1} parent=61 // pred_check_branch
              %250 = sbr.rel target = $region70
            $region69: #{ukan_downsample_block.1} parent=61 // pred_region
              loop: start=0, step=1, limit=1
              $region71: #{ukan_downsample_block.1} parent=69 // loop_pre_header
                _
              $region72: #{ukan_downsample_block.1} parent=69 // loop_header
                %s253 = sphi 0, %s257
                %p254 = scmp.ge.s32.totalorder %s253, 1
                %s258 = sphi %s244, %s244
                %s259 = sphi %s238, %s238
              $region73: #{ukan_downsample_block.1} parent=69 // loop_header_branch
                %256 = sbr.rel (%p254) target = $region77
              $region74: #{ukan_downsample_block.1} parent=69 // loop_body
                %v260 = vld [vmem:[%s258] sm:$0xff]
                %261 = vst [vmem:[%s259] sm:$0xff] %v260
                %v262 = vld [vmem:[%s258 + $0x10] sm:$0xff]
                %263 = vst [vmem:[%s259 + $0x8] sm:$0xff] %v262
                %v264 = vld [vmem:[%s258 + $0x20] sm:$0xff]
                %265 = vst [vmem:[%s259 + $0x10] sm:$0xff] %v264
                %v266 = vld [vmem:[%s258 + $0x30] sm:$0xff]
                %267 = vst [vmem:[%s259 + $0x18] sm:$0xff] %v266
                %v268 = vld [vmem:[%s258 + $0x80] sm:$0xff]
                %269 = vst [vmem:[%s259 + $0x20] sm:$0xff] %v268
                %v270 = vld [vmem:[%s258 + $0x90] sm:$0xff]
                %271 = vst [vmem:[%s259 + $0x28] sm:$0xff] %v270
                %v272 = vld [vmem:[%s258 + $0xa0] sm:$0xff]
                %273 = vst [vmem:[%s259 + $0x30] sm:$0xff] %v272
                %v274 = vld [vmem:[%s258 + $0xb0] sm:$0xff]
                %275 = vst [vmem:[%s259 + $0x38] sm:$0xff] %v274
              $region75: #{ukan_downsample_block.1} parent=69 // loop_footer
                %s257 = sadd.s32 1, %s253
              $region76: #{ukan_downsample_block.1} parent=69 // loop_footer_branch
                %252 = sbr.rel target = $region72
              $region77: #{ukan_downsample_block.1} parent=69 // loop_exit
                _
            $region70: #{ukan_downsample_block.1} parent=61 // pred_fallthru
              _
          $region62: #{ukan_downsample_block.1} parent=57 // pred_fallthru
            _
          %304 = vnop
        $region58: #{ukan_downsample_block.1} parent=15 // pred_fallthru
          _
      $region16: #{ukan_downsample_block.1} parent=5 // pred_fallthru
        _
      %p305 = scmp.le.s32.totalorder 1, %s11
      %p306 = scmp.lt.s32.totalorder %s11, 3
      %p307 = pnand %p305, %p306
      %p308 = pneg %p307
      // Predicated region
      $region93: #{ukan_downsample_block.1} parent=5 // pred_check
        _
      $region94: #{ukan_downsample_block.1} parent=5 // pred_check_branch
        %310 = sbr.rel (%p307) target = $region96
      $region95: #{ukan_downsample_block.1} parent=5 // pred_region
        %s311 = ssub.s32 %s11, 1
        %s312 = sand.u32 %s38, 1
        %s313 = sand.u32 %s38, 1
        %s314 = smul.addr %s313, 128
        %s315 = scalar_lea.vmem [#allocation2], %s314
        // Predicated region
        $region97: #{ukan_downsample_block.1} parent=95 // pred_check
          %p316 = pneg %p51
        $region98: #{ukan_downsample_block.1} parent=95 // pred_check_branch
          %318 = sbr.rel (%p316) target = $region100
        $region99: #{ukan_downsample_block.1} parent=95 // pred_region
          _
        $region100: #{ukan_downsample_block.1} parent=95 // pred_fallthru
          _
        %s319 = sand.u32 %s68, 1
        %s320 = sand.u32 %s68, 1
        %s321 = smul.addr %s320, 64
        %s322 = scalar_lea.vmem [#allocation3], %s321
        // Predicated region
        $region101: #{ukan_downsample_block.1} parent=95 // pred_check
          %p323 = pneg %p81
        $region102: #{ukan_downsample_block.1} parent=95 // pred_check_branch
          %325 = sbr.rel (%p323) target = $region104
        $region103: #{ukan_downsample_block.1} parent=95 // pred_region
          _
        $region104: #{ukan_downsample_block.1} parent=95 // pred_fallthru
          _
        %s326 = sand.u32 %s38, 1
        %s327 = sand.u32 %s38, 1
        %s328 = smul.addr %s327, 128
        %s329 = scalar_lea.vmem [#allocation2], %s328
        %p330 = pneg %p51
        %p331 = pneg %p48
        %s332 = sand.u32 %s68, 1
        %s333 = sand.u32 %s68, 1
        %s334 = smul.addr %s333, 64
        %s335 = scalar_lea.vmem [#allocation3], %s334
        %p336 = pneg %p81
        %p337 = pneg %p78
        %p338 = pneg %p109
        %p339 = pneg %p106
        %s340 = sand.u32 %s96, 1
        %s341 = scalar_lea.sflag [#allocation5], %s340
        %s342 = sand.u32 %s96, 1
        %s343 = smul.addr %s342, 32
        %s344 = scalar_lea.vmem [#allocation4], %s343
        %s345 = smul.u32 4, %s20
        %s346 = sadd.s32 %s21, 1
        %s347 = smul.u32 4, %s20
        %s348 = smul.u32 4, %s20
        %v349 = vld [vmem:[%s315] sm:$0xff]
        %v350 = vld [vmem:[%s315 + $0x8] sm:$0xff]
        %v351 = vld [vmem:[%s315 + $0x10] sm:$0xff]
        %v352 = vld [vmem:[%s315 + $0x18] sm:$0xff]
        %s353 = scalar_lea.vmem %s315, 32 [#allocation2]
        %v354 = vld [vmem:[%s353] sm:$0xff]
        %v355 = vld [vmem:[%s353 + $0x8] sm:$0xff]
        %v356 = vld [vmem:[%s353 + $0x10] sm:$0xff]
        %v357 = vld [vmem:[%s353 + $0x18] sm:$0xff]
        %s358 = scalar_lea.vmem %s315, 64 [#allocation2]
        %v359 = vld [vmem:[%s358] sm:$0xff]
        %v360 = vld [vmem:[%s358 + $0x8] sm:$0xff]
        %v361 = vld [vmem:[%s358 + $0x10] sm:$0xff]
        %v362 = vld [vmem:[%s358 + $0x18] sm:$0xff]
        %s363 = scalar_lea.vmem %s315, 96 [#allocation2]
        %v364 = vld [vmem:[%s363] sm:$0xff]
        %v365 = vld [vmem:[%s363 + $0x8] sm:$0xff]
        %v366 = vld [vmem:[%s363 + $0x10] sm:$0xff]
        %v367 = vld [vmem:[%s363 + $0x18] sm:$0xff]
        %v368 = vld [vmem:[%s322] sm:$0xff]
        %v369 = vld [vmem:[%s322 + $0x8] sm:$0xff]
        %v370 = vld [vmem:[%s322 + $0x10] sm:$0xff]
        %v371 = vld [vmem:[%s322 + $0x18] sm:$0xff]
        %s372 = scalar_lea.vmem %s322, 32 [#allocation3]
        %v373 = vld [vmem:[%s372] sm:$0xff]
        %v374 = vld [vmem:[%s372 + $0x8] sm:$0xff]
        %v375 = vld [vmem:[%s372 + $0x10] sm:$0xff]
        %v376 = vld [vmem:[%s372 + $0x18] sm:$0xff]
        %v377 = vmax.f32 %v349, %v354
        %v378 = vmax.f32 %v350, %v355
        %v379 = vmax.f32 %v351, %v356
        %v380 = vmax.f32 %v352, %v357
        %385 = vrot.lane.b32.xlu0 %v349, 127
        %v386 = vpop.permute.xlu0 %385
        %387 = vrot.lane.b32.xlu0 %v350, 127
        %v388 = vpop.permute.xlu0 %387
        %389 = vrot.lane.b32.xlu0 %v351, 127
        %v390 = vpop.permute.xlu0 %389
        %391 = vrot.lane.b32.xlu0 %v352, 127
        %v392 = vpop.permute.xlu0 %391
        %v397 = vmax.f32 %v377, %v386
        %v398 = vmax.f32 %v378, %v388
        %v399 = vmax.f32 %v379, %v390
        %v400 = vmax.f32 %v380, %v392
        %v401 = vmax.f32 %v359, %v364
        %v402 = vmax.f32 %v360, %v365
        %v403 = vmax.f32 %v361, %v366
        %v404 = vmax.f32 %v362, %v367
        %409 = vrot.lane.b32.xlu0 %v359, 127
        %v410 = vpop.permute.xlu0 %409
        %411 = vrot.lane.b32.xlu0 %v360, 127
        %v412 = vpop.permute.xlu0 %411
        %413 = vrot.lane.b32.xlu0 %v361, 127
        %v414 = vpop.permute.xlu0 %413
        %415 = vrot.lane.b32.xlu0 %v362, 127
        %v416 = vpop.permute.xlu0 %415
        %v421 = vmax.f32 %v401, %v410
        %v422 = vmax.f32 %v402, %v412
        %v423 = vmax.f32 %v403, %v414
        %v424 = vmax.f32 %v404, %v416
        %v425 = vmax.f32 %v368, %v373
        %v426 = vmax.f32 %v369, %v374
        %v427 = vmax.f32 %v370, %v375
        %v428 = vmax.f32 %v371, %v376
        %433 = vrot.lane.b32.xlu0 %v368, 127
        %v434 = vpop.permute.xlu0 %433
        %435 = vrot.lane.b32.xlu0 %v369, 127
        %v436 = vpop.permute.xlu0 %435
        %437 = vrot.lane.b32.xlu0 %v370, 127
        %v438 = vpop.permute.xlu0 %437
        %439 = vrot.lane.b32.xlu0 %v371, 127
        %v440 = vpop.permute.xlu0 %439
        %v445 = vmax.f32 %v425, %v434
        %v446 = vmax.f32 %v426, %v436
        %v447 = vmax.f32 %v427, %v438
        %v448 = vmax.f32 %v428, %v440
        %v449 = vmax.f32 %v397, %v421
        %v450 = vmax.f32 %v398, %v422
        %v451 = vmax.f32 %v399, %v423
        %v452 = vmax.f32 %v400, %v424
        %v457 = vrot.slane %v397, 1
        %v458 = vrot.slane %v398, 1
        %v459 = vrot.slane %v399, 1
        %v460 = vrot.slane %v400, 1
        %v465 = vmax.f32 %v449, %v457
        %v466 = vmax.f32 %v450, %v458
        %v467 = vmax.f32 %v451, %v459
        %v468 = vmax.f32 %v452, %v460
        %v469 = vmax.f32 %v465, 0.0
        %v470 = vmax.f32 %v466, 0.0
        %v471 = vmax.f32 %v467, 0.0
        %v472 = vmax.f32 %v468, 0.0
        %vm473 = vcmask 63488
        %474 = vst.msk [vmem:[%s344] sm:$0x7f] %vm473, %v469
        %475 = vst.msk [vmem:[%s344 + $0x8] sm:$0x7f] %vm473, %v470
        %476 = vst.msk [vmem:[%s344 + $0x10] sm:$0x7f] %vm473, %v471
        %477 = vst.msk [vmem:[%s344 + $0x18] sm:$0x7f] %vm473, %v472
        %v482 = vrot.slane %v445, 1
        %v483 = vrot.slane %v446, 1
        %v484 = vrot.slane %v447, 1
        %v485 = vrot.slane %v448, 1
        %v490 = vmax.f32 %v449, %v482
        %v491 = vmax.f32 %v450, %v483
        %v492 = vmax.f32 %v451, %v484
        %v493 = vmax.f32 %v452, %v485
        %v494 = vmax.f32 %v490, 0.0
        %v495 = vmax.f32 %v491, 0.0
        %v496 = vmax.f32 %v492, 0.0
        %v497 = vmax.f32 %v493, 0.0
        %vm498 = vcmask 64519
        %499 = vst.msk [vmem:[%s344] sm:$0x80] %vm498, %v494
        %500 = vst.msk [vmem:[%s344 + $0x8] sm:$0x80] %vm498, %v495
        %501 = vst.msk [vmem:[%s344 + $0x10] sm:$0x80] %vm498, %v496
        %502 = vst.msk [vmem:[%s344 + $0x18] sm:$0x80] %vm498, %v497
        %s503 = sand.u32 %s96, 1
        %s504 = scalar_lea.sflag [#allocation5], %s503
        %s505 = sand.u32 %s96, 1
        %s506 = smul.addr %s505, 32
        %s507 = scalar_lea.vmem [#allocation4], %s506
        // Predicated region
        $region105: #{ukan_downsample_block.1} parent=95 // pred_check
          %p508 = pneg %p106
        $region106: #{ukan_downsample_block.1} parent=95 // pred_check_branch
          %510 = sbr.rel (%p508) target = $region108
        $region107: #{ukan_downsample_block.1} parent=95 // pred_region
          %s511 = smul.u32 4, %s20
          %s513 = ssub.s32 512, 512
          %514 = vsyncadd %s504, %s513
          %s515 = sadd.s32 %s21, %s511
          %s516 = smul.addr %s515, 128
          %s517 = scalar_lea.hbm %s2, %s516
          %s518 = sshll.u32 %s507, 4
          %s519 = int_to_ptr.vmem [resolvable:$true] %s518
          %524 = dma.vmem_to_hbm [thread:$0]  %s519, 512, %s517, %s504, 128, 128, 8
        $region108: #{ukan_downsample_block.1} parent=95 // pred_fallthru
          _
      $region96: #{ukan_downsample_block.1} parent=5 // pred_fallthru
        _
      %p525 = scmp.le.s32.totalorder 2, %s11
      // Predicated region
      $region109: #{ukan_downsample_block.1} parent=5 // pred_check
        %p526 = pneg %p525
      $region110: #{ukan_downsample_block.1} parent=5 // pred_check_branch
        %528 = sbr.rel (%p526) target = $region112
      $region111: #{ukan_downsample_block.1} parent=5 // pred_region
        %s529 = ssub.s32 %s11, 2
        // Predicated region
        $region113: #{ukan_downsample_block.1} parent=111 // pred_check
          %p530 = pneg %p112
        $region114: #{ukan_downsample_block.1} parent=111 // pred_check_branch
          %532 = sbr.rel (%p530) target = $region116
        $region115: #{ukan_downsample_block.1} parent=111 // pred_region
          %s533 = sand.u32 %s97, 1
          %s534 = scalar_lea.sflag [#allocation5], %s533
          %s535 = sand.u32 %s97, 1
          %s536 = smul.addr %s535, 32
          %s537 = scalar_lea.vmem [#allocation4], %s536
          %538 = dma.done %s534, 512
        $region116: #{ukan_downsample_block.1} parent=111 // pred_fallthru
          _
      $region112: #{ukan_downsample_block.1} parent=5 // pred_fallthru
        _
    $region6: #{ukan_downsample_block.1} parent=1 // loop_footer
      %s15 = sadd.s32 1, %s11
    $region7: #{ukan_downsample_block.1} parent=1 // loop_footer_branch
      %10 = sbr.rel target = $region3
    $region8: #{ukan_downsample_block.1} parent=1 // loop_exit
      _
    %539 = vsyncpa [#allocation5], 1
    %s540 = scalar_lea.sflag [#allocation5], 1
    %541 = vsyncpa %s540, 1

</llo_original>
